<compile_context>
chip_gen: v7x
topology: tpu7x:2x2x1
jax: 0.10.0
libtpu: 0.0.40
codegen_flags: <defaults>
</compile_context>

<pallas_src>
import math
import functools

import jax
import jax.numpy as jnp
from jax import lax
from jax.experimental import pallas as pl
from jax.experimental.pallas import tpu as pltpu


def _vmem_limit_bytes():
    """Generation-aware scoped-VMEM limit (~3/4 of per-core VMEM)."""
    try:
        cap = getattr(pltpu.get_tpu_info(), "vmem_capacity_bytes", None)
        if cap:
            return int(cap) * 3 // 4      # ~96 MiB v5e/v6e, ~48 MiB v7x
    except Exception:
        pass
    return 32 * 1024 * 1024               # conservative fallback


_VMEM_LIMIT = _vmem_limit_bytes()


def _choose_tile(dim, pref):
    """Largest multiple of 128 (then 8) <= pref that divides dim; full dim if
    dim <= pref.  Falls back to the full dim (block == array dim is legal)."""
    if dim <= pref:
        return dim
    for align in (128, 8):
        t = (pref // align) * align
        while t >= align:
            if dim % t == 0:
                return t
            t -= align
    # TODO(synk): pad ragged dims instead of using a full-dim block.
    return dim


# ---------------------------------------------------------------------------
# Tiled matmul kernel (fused QKV projection and O projection)
# ---------------------------------------------------------------------------
def _matmul_kernel(x_ref, w_ref, o_ref, acc_ref):
    @pl.when(pl.program_id(2) == 0)
    def _init():
        acc_ref[...] = jnp.zeros(acc_ref.shape, dtype=acc_ref.dtype)

    acc_ref[...] += jnp.dot(x_ref[...], w_ref[...],
                            preferred_element_type=jnp.float32)

    @pl.when(pl.program_id(2) == pl.num_programs(2) - 1)
    def _finalize():
        o_ref[...] = acc_ref[...].astype(o_ref.dtype)


def _linear(x2d, wt, *, tm_pref=512, tn_pref=256, tk_pref=512):
    """x2d: (M, K); wt: (K, N) pre-transposed weight.  Returns x2d @ wt."""
    M, K = x2d.shape
    Kw, N = wt.shape
    assert K == Kw
    tn = _choose_tile(N, tn_pref)
    tk = _choose_tile(K, tk_pref)
    if M <= tm_pref:
        tm, Mp = M, M
    else:
        tm = tm_pref
        Mp = ((M + tm - 1) // tm) * tm
        if Mp != M:                       # pad M to a tile multiple, slice back
            x2d = jnp.pad(x2d, ((0, Mp - M), (0, 0)))
    out = pl.pallas_call(
        _matmul_kernel,
        out_shape=jax.ShapeDtypeStruct((Mp, N), x2d.dtype),
        grid=(Mp // tm, N // tn, K // tk),
        in_specs=[pl.BlockSpec((tm, tk), lambda i, j, k: (i, k)),
                  pl.BlockSpec((tk, tn), lambda i, j, k: (k, j))],
        out_specs=pl.BlockSpec((tm, tn), lambda i, j, k: (i, j)),
        scratch_shapes=[pltpu.VMEM((tm, tn), jnp.float32)],
        compiler_params=pltpu.CompilerParams(
            dimension_semantics=("parallel", "parallel", "arbitrary"),
            vmem_limit_bytes=_VMEM_LIMIT),
    )(x2d, wt)
    return out[:M] if Mp != M else out


# ---------------------------------------------------------------------------
# RoPE kernel (applied once to Q -- scale folded -- and once to K)
# ---------------------------------------------------------------------------
def _rope_kernel(x_ref, cos_ref, sin_ref, o_ref, *, d_half, scale, use_roll):
    x = x_ref[0].astype(jnp.float32)                       # (ts, D)
    if use_roll:
        rot = pltpu.roll(x, shift=d_half, axis=1)           # [x2, x1] via XLU
    else:
        rot = jnp.concatenate([x[:, d_half:], x[:, :d_half]], axis=-1)
    # sin is sign-folded, so x*cos + rot*sin == x*cos + rotate_half(x)*sin_raw
    y = (x * cos_ref[...] + rot * sin_ref[...]) * scale
    o_ref[0] = y.astype(o_ref.dtype)


def _rope_heads_from_slab(slab, cos, sin_signed, *, num_heads, head_dim,
                          head_offset, scale, ts):
    """slab: (B, S, C) where per-head D-wide column chunks start at column-block
    `head_offset`.  Returns a rotated (B, S, num_heads*head_dim) array."""
    B, S, _ = slab.shape
    D = head_dim
    kernel = functools.partial(_rope_kernel, d_half=D // 2, scale=scale,
                               use_roll=(D % 128 == 0))
    return pl.pallas_call(
        kernel,
        out_shape=jax.ShapeDtypeStruct((B, S, num_heads * D), slab.dtype),
        grid=(B, S // ts, num_heads),
        in_specs=[pl.BlockSpec((1, ts, D),
                               lambda b, si, h: (b, si, head_offset + h)),
                  pl.BlockSpec((ts, D), lambda b, si, h: (si, 0)),
                  pl.BlockSpec((ts, D), lambda b, si, h: (si, 0))],
        out_specs=pl.BlockSpec((1, ts, D), lambda b, si, h: (b, si, h)),
        compiler_params=pltpu.CompilerParams(
            dimension_semantics=("parallel", "parallel", "parallel"),
            vmem_limit_bytes=_VMEM_LIMIT),
    )(slab, cos, sin_signed)


def _rope_rows(x, cos, sin_signed, *, head_dim, scale, ts):
    """x: (R, S, D) head-major rows.  Returns rotated copy, same shape."""
    R, S, D = x.shape
    kernel = functools.partial(_rope_kernel, d_half=D // 2, scale=scale,
                               use_roll=(D % 128 == 0))
    return pl.pallas_call(
        kernel,
        out_shape=jax.ShapeDtypeStruct((R, S, D), x.dtype),
        grid=(R, S // ts),
        in_specs=[pl.BlockSpec((1, ts, D), lambda r, si: (r, si, 0)),
                  pl.BlockSpec((ts, D), lambda r, si: (si, 0)),
                  pl.BlockSpec((ts, D), lambda r, si: (si, 0))],
        out_specs=pl.BlockSpec((1, ts, D), lambda r, si: (r, si, 0)),
        compiler_params=pltpu.CompilerParams(
            dimension_semantics=("parallel", "parallel"),
            vmem_limit_bytes=_VMEM_LIMIT),
    )(x, cos, sin_signed)


# ---------------------------------------------------------------------------
# Flash-style attention kernel (online softmax, optional in-kernel causal mask)
# ---------------------------------------------------------------------------
def _flash_attn_kernel(*refs, tq, tk, causal, has_mask):
    if has_mask:
        q_ref, k_ref, v_ref, mask_ref, o_ref, m_scr, l_scr, acc_scr = refs
    else:
        q_ref, k_ref, v_ref, o_ref, m_scr, l_scr, acc_scr = refs
        mask_ref = None

    qi = pl.program_id(2)
    ki = pl.program_id(3)

    @pl.when(ki == 0)
    def _init():
        m_scr[...] = jnp.full(m_scr.shape, -jnp.inf, dtype=jnp.float32)
        l_scr[...] = jnp.zeros(l_scr.shape, dtype=jnp.float32)
        acc_scr[...] = jnp.zeros(acc_scr.shape, dtype=jnp.float32)

    neg_big = jnp.finfo(jnp.float32).min

    def _step():
        q = q_ref[0]                      # (tq, D) -- RoPE + 1/sqrt(D) applied
        k = k_ref[0]                      # (tk, D) -- RoPE applied
        v = v_ref[0]                      # (tk, D)
        s = lax.dot_general(q, k, (((1,), (1,)), ((), ())),
                            preferred_element_type=jnp.float32)   # (tq, tk)
        if has_mask:
            s = jnp.maximum(s + mask_ref[0], neg_big)   # reference add + clamp
        if causal:
            q_pos = qi * tq + lax.broadcasted_iota(jnp.int32, (tq, tk), 0)
            k_pos = ki * tk + lax.broadcasted_iota(jnp.int32, (tq, tk), 1)
            s = jnp.where(q_pos >= k_pos, s, neg_big)   # mask + clamp merged

        m_prev = m_scr[...]                             # (tq, 1)
        m_new = jnp.maximum(m_prev, jnp.max(s, axis=-1, keepdims=True))
        alpha = jnp.exp(m_prev - m_new)
        p = jnp.exp(s - m_new)                          # (tq, tk) f32
        l_scr[...] = alpha * l_scr[...] + jnp.sum(p, axis=-1, keepdims=True)
        acc_scr[...] = alpha * acc_scr[...] + jnp.dot(
            p.astype(v.dtype), v, preferred_element_type=jnp.float32)
        m_scr[...] = m_new

    if causal:
        @pl.when(ki * tk < (qi + 1) * tq)               # skip fully-masked tiles
        def _():
            _step()
    else:
        _step()

    @pl.when(ki == pl.num_programs(3) - 1)
    def _finalize():
        # Exact division: finalize runs once per q-tile, accuracy is free here.
        o_ref[0] = (acc_scr[...] / l_scr[...]).astype(o_ref.dtype)


def _flash_attention(q, k, v, mask, *, grid, q_index, k_index, v_index, o_index,
                     out_shape, tq, tk, head_dim, causal):
    has_mask = mask is not None
    kernel = functools.partial(_flash_attn_kernel, tq=tq, tk=tk,
                               causal=causal, has_mask=has_mask)
    in_specs = [pl.BlockSpec((1, tq, head_dim), q_index),
                pl.BlockSpec((1, tk, head_dim), k_index),
                pl.BlockSpec((1, tk, head_dim), v_index)]
    args = [q, k, v]
    if has_mask:
        in_specs.append(pl.BlockSpec((1, tq, tk),
                                     lambda b, h, qi, ki: (b, qi, ki)))
        args.append(mask)
    return pl.pallas_call(
        kernel,
        out_shape=out_shape,
        grid=grid,
        in_specs=in_specs,
        out_specs=pl.BlockSpec((1, tq, head_dim), o_index),
        scratch_shapes=[pltpu.VMEM((tq, 1), jnp.float32),          # running max
                        pltpu.VMEM((tq, 1), jnp.float32),          # running denom
                        pltpu.VMEM((tq, head_dim), jnp.float32)],  # accumulator
        compiler_params=pltpu.CompilerParams(
            dimension_semantics=("parallel", "parallel", "parallel", "arbitrary"),
            vmem_limit_bytes=_VMEM_LIMIT),
    )(*args)


# ---------------------------------------------------------------------------
# LlamaAttention wrapper (parameters + forward)
# ---------------------------------------------------------------------------
class LlamaAttentionPallas:
    def __init__(self, hidden_size, num_heads, max_position_embeddings=2048,
                 rope_theta=10000.0, key=None, dtype=jnp.float32):
        assert hidden_size % num_heads == 0
        self.hidden_size = hidden_size
        self.num_heads = num_heads
        self.head_dim = hidden_size // num_heads
        self.max_position_embeddings = max_position_embeddings
        self.rope_theta = rope_theta

        key = jax.random.PRNGKey(0) if key is None else key
        kq, kk, kv, ko = jax.random.split(key, 4)
        init = lambda k: (jax.random.normal(k, (hidden_size, hidden_size),
                                            dtype=jnp.float32)
                          * (1.0 / math.sqrt(hidden_size))).astype(dtype)
        # PyTorch nn.Linear layout (out_features, in_features) kept for reference.
        self.w_q = init(kq)
        self.w_k = init(kk)
        self.w_v = init(kv)
        self.w_o = init(ko)
        # Pre-transposed (in, out) weights, QKV fused into one (H, 3H) slab.
        self.w_qkv_t = jnp.concatenate([self.w_q.T, self.w_k.T, self.w_v.T],
                                       axis=1)
        self.w_o_t = self.w_o.T

    def _rotary_tables(self, seq_len, position_ids):
        dim = self.head_dim
        inv_freq = 1.0 / (self.rope_theta **
                          (jnp.arange(0, dim, 2, dtype=jnp.float32) / dim))
        t = jnp.arange(seq_len, dtype=jnp.float32)
        freqs = jnp.einsum("i,j->ij", t, inv_freq)            # (seq_len, dim/2)
        emb = jnp.concatenate([freqs, freqs], axis=-1)         # (seq_len, dim)
        cos = jnp.cos(emb)[position_ids]                       # (S, dim)
        sin = jnp.sin(emb)[position_ids]
        return cos.astype(jnp.float32), sin.astype(jnp.float32)

    def __call__(self, hidden_states, attention_mask=None, position_ids=None,
                 causal=False, tq=None, tk=None):
        B, S, H = hidden_states.shape
        NH, D = self.num_heads, self.head_dim
        if position_ids is None:
            position_ids = jnp.arange(S, dtype=jnp.int32)

        x2d = hidden_states.reshape(B * S, H)
        # Fused Q/K/V projection: single tiled Pallas matmul, x read once.
        qkv = _linear(x2d, self.w_qkv_t)                       # (B*S, 3H)

        cos, sin = self._rotary_tables(S, position_ids)        # (S, D) f32
        d_half = D // 2
        sign = jnp.concatenate([-jnp.ones((d_half,), jnp.float32),
                                jnp.ones((d_half,), jnp.float32)])
        sin_signed = sin * sign                                # fold rotate sign
        inv_sqrt_d = 1.0 / math.sqrt(D)

        tq = tq if tq is not None else _choose_tile(S, 512)
        tk = tk if tk is not None else _choose_tile(S, 512)
        ts = _choose_tile(S, 512)

        mask = None
        if attention_mask is not None:
            mask = attention_mask.reshape(B, S, S).astype(jnp.float32)

        grid = (B, NH, S // tq, S // tk)
        out_dtype = hidden_states.dtype

        if D % 128 == 0:
            # Lane-aligned head_dim: no transposes anywhere -- read q/k/v from
            # the (B, S, *) slabs with per-head column blocks, write (B, S, H).
            qkv3 = qkv.reshape(B, S, 3 * H)
            q_rot = _rope_heads_from_slab(qkv3, cos, sin_signed, num_heads=NH,
                                          head_dim=D, head_offset=0,
                                          scale=inv_sqrt_d, ts=ts)   # (B, S, H)
            k_rot = _rope_heads_from_slab(qkv3, cos, sin_signed, num_heads=NH,
                                          head_dim=D, head_offset=NH,
                                          scale=1.0, ts=ts)          # (B, S, H)
            attn = _flash_attention(
                q_rot, k_rot, qkv3, mask,
                grid=grid,
                q_index=lambda b, h, qi, ki: (b, qi, h),
                k_index=lambda b, h, qi, ki: (b, ki, h),
                v_index=lambda b, h, qi, ki: (b, ki, 2 * NH + h),
                o_index=lambda b, h, qi, ki: (b, qi, h),
                out_shape=jax.ShapeDtypeStruct((B, S, H), out_dtype),
                tq=tq, tk=tk, head_dim=D, causal=causal)
            attn2d = attn.reshape(B * S, H)
        else:
            # TODO(synk): unaligned head_dim falls back to a (B*NH, S, D) layout
            # with JAX-level transposes around attention.
            def to_heads(cols):
                return (cols.reshape(B, S, NH, D).transpose(0, 2, 1, 3)
                            .reshape(B * NH, S, D))
            q = to_heads(qkv[:, :H])
            k = to_heads(qkv[:, H:2 * H])
            v = to_heads(qkv[:, 2 * H:])
            q_rot = _rope_rows(q, cos, sin_signed, head_dim=D,
                               scale=inv_sqrt_d, ts=ts)
            k_rot = _rope_rows(k, cos, sin_signed, head_dim=D,
                               scale=1.0, ts=ts)
            attn = _flash_attention(
                q_rot, k_rot, v, mask,
                grid=grid,
                q_index=lambda b, h, qi, ki: (b * NH + h, qi, 0),
                k_index=lambda b, h, qi, ki: (b * NH + h, ki, 0),
                v_index=lambda b, h, qi, ki: (b * NH + h, ki, 0),
                o_index=lambda b, h, qi, ki: (b * NH + h, qi, 0),
                out_shape=jax.ShapeDtypeStruct((B * NH, S, D), out_dtype),
                tq=tq, tk=tk, head_dim=D, causal=causal)
            attn2d = (attn.reshape(B, NH, S, D).transpose(0, 2, 1, 3)
                          .reshape(B * S, H))

        out = _linear(attn2d, self.w_o_t).reshape(B, S, H)
        return out


# ---------------------------------------------------------------------------
# Pure-JAX reference (mirrors the PyTorch forward) for correctness check
# ---------------------------------------------------------------------------
def _reference_forward(mod, hidden_states, attention_mask, position_ids):
    B, S, H = hidden_states.shape
    NH, D = mod.num_heads, mod.head_dim
    x2d = hidden_states.reshape(B * S, H)
    q = (x2d @ mod.w_q.T).reshape(B, S, NH, D).transpose(0, 2, 1, 3)
    k = (x2d @ mod.w_k.T).reshape(B, S, NH, D).transpose(0, 2, 1, 3)
    v = (x2d @ mod.w_v.T).reshape(B, S, NH, D).transpose(0, 2, 1, 3)
    cos, sin = mod._rotary_tables(S, position_ids)
    cos_b = cos[None, None]
    sin_b = sin[None, None]

    def rot_half(x):
        d2 = x.shape[-1] // 2
        return jnp.concatenate([-x[..., d2:], x[..., :d2]], axis=-1)

    q = q * cos_b + rot_half(q) * sin_b
    k = k * cos_b + rot_half(k) * sin_b
    w = jnp.einsum("bhqd,bhkd->bhqk", q, k) / math.sqrt(D)
    w = w + attention_mask
    w = jnp.maximum(w, jnp.finfo(jnp.float32).min)
    w = jax.nn.softmax(w.astype(jnp.float32), axis=-1)
    o = jnp.einsum("bhqk,bhkd->bhqd", w, v)
    o = o.transpose(0, 2, 1, 3).reshape(B * S, H)
    return (o @ mod.w_o.T).reshape(B, S, H)


if __name__ == "__main__":
    min_val = jnp.finfo(jnp.float32).min
    key = jax.random.PRNGKey(0)
    k_x, k_w, k_x2, k_w2 = jax.random.split(key, 4)

    # --- Test 1: small shapes, explicit additive mask (fallback layout path) --
    B, S, H, NH = 2, 8, 32, 4
    hidden_states = jax.random.normal(k_x, (B, S, H), dtype=jnp.float32)
    causal_bool = jnp.tril(jnp.ones((S, S), dtype=bool))
    attn_mask = jnp.where(causal_bool, 0.0, min_val).astype(jnp.float32)
    attn_mask = jnp.broadcast_to(attn_mask[None, None], (B, 1, S, S))
    position_ids = jnp.arange(S, dtype=jnp.int32)

    module = LlamaAttentionPallas(hidden_size=H, num_heads=NH, key=k_w)
    out = module(hidden_states, attention_mask=attn_mask,
                 position_ids=position_ids)
    out = jax.block_until_ready(out)
    ref = _reference_forward(module, hidden_states, attn_mask, position_ids)
    assert out.shape == (B, S, H)
    assert jnp.allclose(out, ref, rtol=1e-3, atol=1e-3), "mismatch (mask path)"

    # --- Test 2: lane-aligned head_dim (D=128), in-kernel causal mask, tiled --
    B2, S2, H2, NH2 = 1, 512, 256, 2                  # head_dim = 128
    hs2 = jax.random.normal(k_x2, (B2, S2, H2), dtype=jnp.float32)
    pos2 = jnp.arange(S2, dtype=jnp.int32)
    mask2 = jnp.where(jnp.tril(jnp.ones((S2, S2), dtype=bool)), 0.0, min_val)
    mask2 = jnp.broadcast_to(mask2[None, None], (B2, 1, S2, S2)).astype(jnp.float32)

    module2 = LlamaAttentionPallas(hidden_size=H2, num_heads=NH2, key=k_w2)
    # tq/tk chosen to exercise grid > 1 and causal tile skipping.
    out2 = module2(hs2, attention_mask=None, position_ids=pos2,
                   causal=True, tq=256, tk=128)
    out2 = jax.block_until_ready(out2)
    ref2 = _reference_forward(module2, hs2, mask2, pos2)
    assert out2.shape == (B2, S2, H2)
    assert jnp.allclose(out2, ref2, rtol=2e-3, atol=2e-3), "mismatch (causal path)"

    print("KERNEL_OK")
</pallas_src>

<mosaic_0001>
module attributes {stable_mosaic.version = 11 : i64} {
  func.func @_matmul_kernel(%arg0: i32, %arg1: i32, %arg2: i32, %arg3: memref<16x32xf32, #tpu.memory_space<vmem>>, %arg4: memref<32x96xf32, #tpu.memory_space<vmem>>, %arg5: memref<16x96xf32, #tpu.memory_space<vmem>>, %arg6: memref<16x96xf32, #tpu.memory_space<vmem>>) attributes {dimension_semantics = [#tpu.dimension_semantics<parallel>, #tpu.dimension_semantics<parallel>, #tpu.dimension_semantics<arbitrary>], iteration_bounds = array<i64: 1, 1, 1>, scalar_prefetch = 0 : i64, scratch_operands = 1 : i64, tpu.core_type = #tpu.core_type<tc>, window_params = [{transform_indices = @transform_0, window_bounds = array<i64: 16, 32>}, {transform_indices = @transform_1, window_bounds = array<i64: 32, 96>}, {transform_indices = @transform_2, window_bounds = array<i64: 16, 96>}]} {
    %c0_i32 = arith.constant 0 : i32
    %0 = arith.cmpi eq, %arg2, %c0_i32 : i32
    %1 = arith.extui %0 : i1 to i32
    %c0_i32_0 = arith.constant 0 : i32
    %2 = arith.cmpi ne, %1, %c0_i32_0 : i32
    scf.if %2 {
      %cst_10 = arith.constant 0.000000e+00 : f32
      %12 = vector.broadcast %cst_10 : f32 to vector<16x96xf32>
      %c0_11 = arith.constant 0 : index
      %c0_12 = arith.constant 0 : index
      %13 = vector.load %arg6[%c0_11, %c0_12] : memref<16x96xf32, #tpu.memory_space<vmem>>, vector<16x96xf32>
      tpu.vector_store %arg6[%c0_11, %c0_12], %12 {strides = array<i32>} : memref<16x96xf32, #tpu.memory_space<vmem>>, vector<16x96xf32>,
    } else {
    }
    %c0 = arith.constant 0 : index
    %c0_1 = arith.constant 0 : index
    %3 = vector.load %arg6[%c0, %c0_1] : memref<16x96xf32, #tpu.memory_space<vmem>>, vector<16x96xf32>
    %c0_2 = arith.constant 0 : index
    %c0_3 = arith.constant 0 : index
    %4 = vector.load %arg3[%c0_2, %c0_3] : memref<16x32xf32, #tpu.memory_space<vmem>>, vector<16x32xf32>
    %c0_4 = arith.constant 0 : index
    %c0_5 = arith.constant 0 : index
    %5 = vector.load %arg4[%c0_4, %c0_5] : memref<32x96xf32, #tpu.memory_space<vmem>>, vector<32x96xf32>
    %cst = arith.constant dense<0.000000e+00> : vector<16x96xf32>
    %6 = tpu.matmul %4, %5, %cst {dimension_numbers = #tpu.dot_dimension_numbers<[1], [0], [0], [1], [0, 0, 1, 1], [], []>} : vector<16x32xf32>, vector<32x96xf32>, vector<16x96xf32> -> vector<16x96xf32>
    %7 = arith.addf %3, %6 : vector<16x96xf32>
    %c0_6 = arith.constant 0 : index
    %c0_7 = arith.constant 0 : index
    %8 = vector.load %arg6[%c0_6, %c0_7] : memref<16x96xf32, #tpu.memory_space<vmem>>, vector<16x96xf32>
    tpu.vector_store %arg6[%c0_6, %c0_7], %7 {strides = array<i32>} : memref<16x96xf32, #tpu.memory_space<vmem>>, vector<16x96xf32>,
    %c0_i32_8 = arith.constant 0 : i32
    %9 = arith.cmpi eq, %arg2, %c0_i32_8 : i32
    %10 = arith.extui %9 : i1 to i32
    %c0_i32_9 = arith.constant 0 : i32
    %11 = arith.cmpi ne, %10, %c0_i32_9 : i32
    scf.if %11 {
      %c0_10 = arith.constant 0 : index
      %c0_11 = arith.constant 0 : index
      %12 = vector.load %arg6[%c0_10, %c0_11] : memref<16x96xf32, #tpu.memory_space<vmem>>, vector<16x96xf32>
      %c0_12 = arith.constant 0 : index
      %c0_13 = arith.constant 0 : index
      %13 = vector.load %arg5[%c0_12, %c0_13] : memref<16x96xf32, #tpu.memory_space<vmem>>, vector<16x96xf32>
      tpu.vector_store %arg5[%c0_12, %c0_13], %12 {strides = array<i32>} : memref<16x96xf32, #tpu.memory_space<vmem>>, vector<16x96xf32>,
    } else {
    }
    return
  }
  func.func @transform_0(%arg0: i32, %arg1: i32, %arg2: i32) -> (i32, i32) {
    %c0_i32 = arith.constant 0 : i32
    return %arg0, %arg2 : i32, i32
  }
  func.func @transform_1(%arg0: i32, %arg1: i32, %arg2: i32) -> (i32, i32) {
    %c0_i32 = arith.constant 0 : i32
    return %arg2, %arg1 : i32, i32
  }
  func.func @transform_2(%arg0: i32, %arg1: i32, %arg2: i32) -> (i32, i32) {
    %c0_i32 = arith.constant 0 : i32
    return %arg0, %arg1 : i32, i32
  }
}

</mosaic_0001>

<llo_original>
// kernel: tpu_custom_call.1
$region0: #{tpu_custom_call.1}
  #allocation0 [shape = 'u32[]', space=smem, size = 0x4, offset = 0x4, fixed_abs, tag = 'smem constant byte address 0x4 - core index']
  #allocation1 [shape = 'u32[144,128]{1,0:T(1,128)}', space=vmem, size = 0x12000, scoped, tag = 'internal scratch']
  #allocation2 [shape = 'f32[16,96]{1,0:T(8,128)}', space=vmem, size = 0x2000, scoped, tag = 'scratch operand']
  %s0 = inlined_call_operand.hbm [shape: f32[16,32], index: 0, kind: input, shape index: {}]
  %s1 = inlined_call_operand.hbm [shape: f32[32,96], index: 1, kind: input, shape index: {}]
  %s2 = inlined_call_operand.hbm [shape: f32[16,96], index: 2, kind: output, shape index: {}]
  %s3 = sld [smem:[#allocation0]]
  $region34: #{tpu_custom_call.1} parent=0
    _
  %s5 = ssub.s32 1, %s3
  %s6 = scalar_select 0, %s5, %s3
  $region1: #{tpu_custom_call.1} parent=0
    #allocation3 [shape = 'u8[8192]{0}', space=vmem, size = 0x2000, scoped, tag = 'input window, operand 0, single buffered']
    #allocation4 [shape = 's32[1]{0}', space=sflag, size = 0x4, scoped, tag = 'scoped memory for tpu_custom_call.1']
    #allocation5 [shape = 's32[1]{0}', space=sflag, size = 0x4, scoped, tag = 'scoped memory for tpu_custom_call.1']
    #allocation6 [shape = 'u8[16384]{0}', space=vmem, size = 0x4000, scoped, tag = 'input window, operand 1, single buffered']
    #allocation7 [shape = 's32[1]{0}', space=sflag, size = 0x4, scoped, tag = 'scoped memory for tpu_custom_call.1']
    #allocation8 [shape = 'u8[8192]{0}', space=vmem, size = 0x2000, scoped, tag = 'output window, operand 0, single buffered']
    %7 = vsyncpa [#allocation4], 0
    %8 = vsyncpa [#allocation7], 0
    %9 = vsyncpa [#allocation5], 0
    // Predicated region
    $region2: #{tpu_custom_call.1} parent=1 // pred_check
      _
    $region3: #{tpu_custom_call.1} parent=1 // pred_check_branch
      %11 = sbr.rel (0) target = $region5
    $region4: #{tpu_custom_call.1} parent=1 // pred_region
      %s13 = ssub.s32 256, 256
      %14 = vsyncadd [#allocation4], %s13
      %s15 = sshll.u32 [#allocation3], 4
      %s16 = int_to_ptr.vmem [resolvable:$true] %s15
      %21 = dma.hbm_to_vmem [thread:$0]  %s0, 256, %s16, [#allocation4], 128, 128, 8
    $region5: #{tpu_custom_call.1} parent=1 // pred_fallthru
      _
    // Predicated region
    $region6: #{tpu_custom_call.1} parent=1 // pred_check
      _
    $region7: #{tpu_custom_call.1} parent=1 // pred_check_branch
      %23 = sbr.rel (0) target = $region9
    $region8: #{tpu_custom_call.1} parent=1 // pred_region
      %s25 = ssub.s32 512, 512
      %26 = vsyncadd [#allocation7], %s25
      %s27 = sshll.u32 [#allocation6], 4
      %s28 = int_to_ptr.vmem [resolvable:$true] %s27
      %33 = dma.hbm_to_vmem [thread:$0]  %s1, 512, %s28, [#allocation7], 128, 128, 8
    $region9: #{tpu_custom_call.1} parent=1 // pred_fallthru
      _
    // Predicated region
    $region10: #{tpu_custom_call.1} parent=1 // pred_check
      _
    $region11: #{tpu_custom_call.1} parent=1 // pred_check_branch
      %35 = sbr.rel (0) target = $region13
    $region12: #{tpu_custom_call.1} parent=1 // pred_region
      %36 = dma.done [#allocation4], 256
    $region13: #{tpu_custom_call.1} parent=1 // pred_fallthru
      _
    // Predicated region
    $region14: #{tpu_custom_call.1} parent=1 // pred_check
      _
    $region15: #{tpu_custom_call.1} parent=1 // pred_check_branch
      %38 = sbr.rel (0) target = $region17
    $region16: #{tpu_custom_call.1} parent=1 // pred_region
      %39 = dma.done [#allocation7], 512
    $region17: #{tpu_custom_call.1} parent=1 // pred_fallthru
      _
    %p40 = scmp.eq.s32.totalorder 0, 0
    // Predicated region
    $region18: #{tpu_custom_call.1} parent=1 // pred_check
      %p41 = pneg %p40
    $region19: #{tpu_custom_call.1} parent=1 // pred_check_branch
      %43 = sbr.rel (%p41) target = $region21
    $region20: #{tpu_custom_call.1} parent=1 // pred_region
      %vm44 = vcmask 785408
      %45 = vst.msk [vmem:[#allocation2] sm:$0xff] %vm44, 0.0
      %46 = vst.msk [vmem:[#allocation2 + $0x8] sm:$0xff] %vm44, 0.0
    $region21: #{tpu_custom_call.1} parent=1 // pred_fallthru
      _
    %v47 = vld [vmem:[#allocation2] sm:$0xff]
    %v48 = vld [vmem:[#allocation2 + $0x8] sm:$0xff]
    %v49 = vld [vmem:[#allocation3] sm:$0xff]
    %v50 = vld [vmem:[#allocation3 + $0x8] sm:$0xff]
    %v51 = vld [vmem:[#allocation6] sm:$0xff]
    %v52 = vld [vmem:[#allocation6 + $0x8] sm:$0xff]
    %v53 = vld [vmem:[#allocation6 + $0x10] sm:$0xff]
    %v54 = vld [vmem:[#allocation6 + $0x18] sm:$0xff]
    %vm55 = vcmask 261120
    %v57 = vsel %vm55, %v49, 0
    %v60 = vsel %vm55, %v50, 0
    %62 = vmatprep.subr.mxu0 0.0
    %63 = vmatpush1.msra.mxu0 %v51
    %64 = vmatprep.subr.mxu0 0.0
    %65 = vmatpush1.msra.mxu0 %v52
    %66 = vmatprep.subr.mxu0 0.0
    %67 = vmatpush1.msra.mxu0 %v53
    %68 = vmatprep.subr.mxu0 0.0
    %69 = vmatpush1.msra.mxu0 %v54
    %70 = vmatprep.subr.mxu0 0.0
    %71 = vmatpush1.msra.mxu0 0.0
    %72 = vmatprep.subr.mxu0 0.0
    %73 = vmatpush1.msra.mxu0 0.0
    %74 = vmatprep.subr.mxu0 0.0
    %75 = vmatpush1.msra.mxu0 0.0
    %76 = vmatprep.subr.mxu0 0.0
    %77 = vmatpush1.msra.mxu0 0.0
    %78 = vmatprep.subr.mxu0 0.0
    %79 = vmatpush1.msra.mxu0 0.0
    %80 = vmatprep.subr.mxu0 0.0
    %81 = vmatpush1.msra.mxu0 0.0
    %82 = vmatprep.subr.mxu0 0.0
    %83 = vmatpush1.msra.mxu0 0.0
    %84 = vmatprep.subr.mxu0 0.0
    %85 = vmatpush1.msra.mxu0 0.0
    %86 = vmatprep.subr.mxu0 0.0
    %87 = vmatpush1.msra.mxu0 0.0
    %88 = vmatprep.subr.mxu0 0.0
    %89 = vmatpush1.msra.mxu0 0.0
    %90 = vmatprep.subr.mxu0 0.0
    %91 = vmatpush1.msra.mxu0 0.0
    %92 = vmatprep.subr.mxu0 0.0
    %93 = vmatpush1.msra.mxu0 0.0
    %94 = vmatprep.subr.mxu0 0.0
    %95 = vmatpush1.msra.mxu0 0.0
    %96 = vmatprep.subr.mxu0 0.0
    %97 = vmatpush1.msra.mxu0 0.0
    %98 = vmatprep.subr.mxu0 0.0
    %99 = vmatpush1.msra.mxu0 0.0
    %100 = vmatprep.subr.mxu0 0.0
    %101 = vmatpush1.msra.mxu0 0.0
    %102 = vmatprep.subr.mxu0 0.0
    %103 = vmatpush1.msra.mxu0 0.0
    %104 = vmatprep.subr.mxu0 0.0
    %105 = vmatpush1.msra.mxu0 0.0
    %106 = vmatprep.subr.mxu0 0.0
    %107 = vmatpush1.msra.mxu0 0.0
    %108 = vmatprep.subr.mxu0 0.0
    %109 = vmatpush1.msra.mxu0 0.0
    %110 = vmatprep.subr.mxu0 0.0
    %111 = vmatpush1.msra.mxu0 0.0
    %112 = vmatprep.subr.mxu0 0.0
    %113 = vmatpush1.msra.mxu0 0.0
    %114 = vmatprep.subr.mxu0 0.0
    %115 = vmatpush1.msra.mxu0 0.0
    %116 = vmatprep.subr.mxu0 0.0
    %117 = vmatpush1.msra.mxu0 0.0
    %118 = vmatprep.subr.mxu0 0.0
    %119 = vmatpush1.msra.mxu0 0.0
    %120 = vmatprep.subr.mxu0 0.0
    %121 = vmatpush1.msra.mxu0 0.0
    %122 = vmatprep.subr.mxu0 0.0
    %123 = vmatpush1.msra.mxu0 0.0
    %124 = vmatprep.subr.mxu0 0.0
    %125 = vmatpush1.msra.mxu0 0.0
    %126 = vmatprep.mubr.f32.mxu0 0.0
    %127 = vmatmul.mubr.f32.gmra.mrb[0].mxu0 %v57
    %v128 = vpop.f32.mrb[0].mxu0
    %v129 = vadd.f32 0.0, %v128
    %v130 = vpop.f32.mrb[0].mxu0
    %131 = vmatprep.mubr.f32.mxu0 0.0
    %132 = vmatmul.mubr.f32.gmra.mrb[0].mxu0 %v60
    %v133 = vpop.f32.mrb[0].mxu0
    %v134 = vadd.f32 0.0, %v133
    %v135 = vpop.f32.mrb[0].mxu0
    %136 = vdwg.mxu0
    %v137 = vadd.f32 %v47, %v129
    %v138 = vadd.f32 %v48, %v134
    %vm139 = vcmask 785408
    %140 = vst.msk [vmem:[#allocation2] sm:$0xff] %vm139, %v137
    %141 = vst.msk [vmem:[#allocation2 + $0x8] sm:$0xff] %vm139, %v138
    // Predicated region
    $region22: #{tpu_custom_call.1} parent=1 // pred_check
      %p142 = pneg %p40
    $region23: #{tpu_custom_call.1} parent=1 // pred_check_branch
      %144 = sbr.rel (%p142) target = $region25
    $region24: #{tpu_custom_call.1} parent=1 // pred_region
      %v145 = vld [vmem:[#allocation2] sm:$0xff]
      %v146 = vld [vmem:[#allocation2 + $0x8] sm:$0xff]
      %147 = vst.msk [vmem:[#allocation8] sm:$0xff] %vm139, %v145
      %148 = vst.msk [vmem:[#allocation8 + $0x8] sm:$0xff] %vm139, %v146
    $region25: #{tpu_custom_call.1} parent=1 // pred_fallthru
      _
    // Predicated region
    $region26: #{tpu_custom_call.1} parent=1 // pred_check
      _
    $region27: #{tpu_custom_call.1} parent=1 // pred_check_branch
      %150 = sbr.rel (0) target = $region29
    $region28: #{tpu_custom_call.1} parent=1 // pred_region
      %s152 = ssub.s32 256, 256
      %153 = vsyncadd [#allocation5], %s152
      %s154 = sshll.u32 [#allocation8], 4
      %s155 = int_to_ptr.vmem [resolvable:$true] %s154
      %160 = dma.vmem_to_hbm [thread:$0]  %s155, 256, %s2, [#allocation5], 128, 128, 8
    $region29: #{tpu_custom_call.1} parent=1 // pred_fallthru
      _
    // Predicated region
    $region30: #{tpu_custom_call.1} parent=1 // pred_check
      _
    $region31: #{tpu_custom_call.1} parent=1 // pred_check_branch
      %162 = sbr.rel (0) target = $region33
    $region32: #{tpu_custom_call.1} parent=1 // pred_region
      %163 = dma.done [#allocation5], 256
    $region33: #{tpu_custom_call.1} parent=1 // pred_fallthru
      _
    %164 = vsyncpa [#allocation4], 1
    %165 = vsyncpa [#allocation7], 1
    %166 = vsyncpa [#allocation5], 1

</llo_original>
